<compile_context>
chip_gen: v7x
topology: tpu7x:2x2x1
jax: 0.10.0
libtpu: 0.0.40
codegen_flags: <defaults>
</compile_context>

<pallas_src>
import jax
import jax.numpy as jnp
from jax import lax
from jax.experimental import pallas as pl
from jax.experimental.pallas import tpu as pltpu


def _band_conv3x3_weights(w_hwio, W):
    """Fold kw taps + W-direction zero padding into banded matmul weights.

    Returns (3, W*Cin, W*Cout) bf16.  For row-tap kh, entry
    [wi*Cin + ci, wo*Cout + co] = w_hwio[kh, wi-wo+1, ci, co] when |wi-wo| <= 1,
    else 0.  Out-of-range pixels simply have no row, which implements the
    left/right zero padding of the 'same' 3x3 conv exactly.
    """
    f32 = w_hwio.astype(jnp.float32)
    mats = []
    for kh in range(3):
        m = sum(
            jnp.kron(jnp.eye(W, W, k=-(kw - 1), dtype=jnp.float32), f32[kh, kw])
            for kw in range(3)
        )
        mats.append(m)
    return jnp.stack(mats).astype(jnp.bfloat16)


def make_basic_block_kernel(H, W, Cin, Cmid, Cout):
    """One grid step = one batch element, fully resident in VMEM, lane-dense."""
    WCin, WCmid = W * Cin, W * Cmid

    def kernel(x_ref, w1_ref, s1_ref, b1_ref, w2_ref, s2_ref, b2_ref,
               o_ref, xpad_ref, mpad_ref):
        # ---- stage H-zero-padded, lane-dense bf16 input (2 full-width border rows) ----
        xpad_ref[0:1, :] = jnp.zeros((1, WCin), jnp.bfloat16)
        xpad_ref[H + 1:H + 2, :] = jnp.zeros((1, WCin), jnp.bfloat16)
        xpad_ref[1:H + 1, :] = x_ref[0].astype(jnp.bfloat16)

        # ---- conv1: 3 banded matmuls (M=H, K=W*Cin, N=W*Cmid), f32 accumulation ----
        acc1 = jnp.dot(xpad_ref[0:H, :], w1_ref[0], preferred_element_type=jnp.float32)
        acc1 += jnp.dot(xpad_ref[1:H + 1, :], w1_ref[1], preferred_element_type=jnp.float32)
        acc1 += jnp.dot(xpad_ref[2:H + 2, :], w1_ref[2], preferred_element_type=jnp.float32)

        # ---- bn1 (folded, pre-tiled scale/bias) + relu ----
        out1 = jnp.maximum(acc1 * s1_ref[...] + b1_ref[...], 0.0)

        # ---- stage padded intermediate for conv2 ----
        mpad_ref[0:1, :] = jnp.zeros((1, WCmid), jnp.bfloat16)
        mpad_ref[H + 1:H + 2, :] = jnp.zeros((1, WCmid), jnp.bfloat16)
        mpad_ref[1:H + 1, :] = out1.astype(jnp.bfloat16)

        # ---- conv2: 3 banded matmuls ----
        acc2 = jnp.dot(mpad_ref[0:H, :], w2_ref[0], preferred_element_type=jnp.float32)
        acc2 += jnp.dot(mpad_ref[1:H + 1, :], w2_ref[1], preferred_element_type=jnp.float32)
        acc2 += jnp.dot(mpad_ref[2:H + 2, :], w2_ref[2], preferred_element_type=jnp.float32)

        # ---- bn2 + exact-f32 residual + relu; full-lane-width (128) store ----
        o_ref[0] = jnp.maximum(acc2 * s2_ref[...] + b2_ref[...] + x_ref[0], 0.0)

    return kernel


def basic_block_forward(x_nhwc, w1_hwio, w2_hwio, scale1, bias1, scale2, bias2):
    """BasicBlock forward (stride=1, downsample=None, eval-mode BN)."""
    B, H, W, Cin = x_nhwc.shape
    Cmid = w1_hwio.shape[-1]
    Cout = w2_hwio.shape[-1]
    assert Cin == Cout, "downsample=None requires inplanes == planes"

    # Host-side layout plumbing only: lane-dense activations, banded bf16
    # weights (kw taps + W padding folded in), pre-tiled BN scale/bias.
    x_l = x_nhwc.reshape(B, H, W * Cin)
    w1_b = _band_conv3x3_weights(w1_hwio, W)          # (3, W*Cin, W*Cmid) bf16
    w2_b = _band_conv3x3_weights(w2_hwio, W)          # (3, W*Cmid, W*Cout) bf16
    s1_t = jnp.tile(scale1, W).reshape(1, W * Cmid)
    b1_t = jnp.tile(bias1, W).reshape(1, W * Cmid)
    s2_t = jnp.tile(scale2, W).reshape(1, W * Cout)
    b2_t = jnp.tile(bias2, W).reshape(1, W * Cout)

    kernel = make_basic_block_kernel(H, W, Cin, Cmid, Cout)
    out_l = pl.pallas_call(
        kernel,
        out_shape=jax.ShapeDtypeStruct((B, H, W * Cout), jnp.float32),
        grid=(B,),
        in_specs=[
            pl.BlockSpec((1, H, W * Cin), lambda b: (b, 0, 0)),          # x (lane-dense)
            pl.BlockSpec((3, W * Cin, W * Cmid), lambda b: (0, 0, 0)),   # w1 (banded)
            pl.BlockSpec((1, W * Cmid), lambda b: (0, 0)),               # bn1 scale (tiled)
            pl.BlockSpec((1, W * Cmid), lambda b: (0, 0)),               # bn1 bias
            pl.BlockSpec((3, W * Cmid, W * Cout), lambda b: (0, 0, 0)),  # w2 (banded)
            pl.BlockSpec((1, W * Cout), lambda b: (0, 0)),               # bn2 scale
            pl.BlockSpec((1, W * Cout), lambda b: (0, 0)),               # bn2 bias
        ],
        out_specs=pl.BlockSpec((1, H, W * Cout), lambda b: (b, 0, 0)),
        scratch_shapes=[
            pltpu.VMEM((H + 2, W * Cin), jnp.bfloat16),    # H-padded input (bf16)
            pltpu.VMEM((H + 2, W * Cmid), jnp.bfloat16),   # H-padded relu(bn1(conv1))
        ],
        compiler_params=pltpu.CompilerParams(
            dimension_semantics=("parallel",)),            # v7x megacore; free elsewhere
    )(x_l, w1_b, s1_t, b1_t, w2_b, s2_t, b2_t)

    return out_l.reshape(B, H, W, Cout)


def ref_forward(x_nhwc, w1_hwio, w2_hwio, bn1, bn2, eps=1e-5):
    """Pure-JAX f32 reference (eval-mode BN)."""
    def conv(x, w):
        return lax.conv_general_dilated(
            x, w, window_strides=(1, 1), padding="SAME",
            dimension_numbers=("NHWC", "HWIO", "NHWC"),
            precision=lax.Precision.HIGHEST)

    g1, b1, m1, v1 = bn1
    g2, b2, m2, v2 = bn2
    out = conv(x_nhwc, w1_hwio)
    out = (out - m1) / jnp.sqrt(v1 + eps) * g1 + b1
    out = jnp.maximum(out, 0.0)
    out = conv(out, w2_hwio)
    out = (out - m2) / jnp.sqrt(v2 + eps) * g2 + b2
    out = jnp.maximum(out + x_nhwc, 0.0)
    return out


if __name__ == "__main__":
    # small deterministic setup: inplanes = planes = 8, stride = 1, downsample = None
    # (W * C = 128 -> exactly lane-dense)
    B, C, H, W = 2, 8, 16, 16          # PyTorch input layout is NCHW
    planes = C
    eps = 1e-5

    key = jax.random.PRNGKey(0)
    k = jax.random.split(key, 10)

    x_nchw = jax.random.normal(k[0], (B, C, H, W), jnp.float32)

    # conv weights in PyTorch OIHW, transposed to HWIO for the kernel
    w1_oihw = jax.random.normal(k[1], (planes, C, 3, 3), jnp.float32) * 0.1
    w2_oihw = jax.random.normal(k[2], (planes, planes, 3, 3), jnp.float32) * 0.1
    w1_hwio = jnp.transpose(w1_oihw, (2, 3, 1, 0))
    w2_hwio = jnp.transpose(w2_oihw, (2, 3, 1, 0))

    # BatchNorm parameters (eval mode: running stats)
    g1 = 1.0 + 0.1 * jax.random.normal(k[3], (planes,), jnp.float32)
    b1 = 0.1 * jax.random.normal(k[4], (planes,), jnp.float32)
    m1 = 0.1 * jax.random.normal(k[5], (planes,), jnp.float32)
    v1 = jnp.abs(jax.random.normal(k[6], (planes,), jnp.float32)) + 0.5
    g2 = 1.0 + 0.1 * jax.random.normal(k[7], (planes,), jnp.float32)
    b2 = 0.1 * jax.random.normal(k[8], (planes,), jnp.float32)
    m2 = 0.1 * jax.random.normal(k[9], (planes,), jnp.float32)
    v2 = jnp.abs(jax.random.normal(key, (planes,), jnp.float32)) + 0.5

    # fold BN into per-channel scale / bias
    scale1 = g1 / jnp.sqrt(v1 + eps)
    bias1 = b1 - m1 * scale1
    scale2 = g2 / jnp.sqrt(v2 + eps)
    bias2 = b2 - m2 * scale2

    # NCHW -> NHWC at the boundary (kernel handles lane-dense layout internally)
    x_nhwc = jnp.transpose(x_nchw, (0, 2, 3, 1))

    out_nhwc = basic_block_forward(x_nhwc, w1_hwio, w2_hwio,
                                   scale1, bias1, scale2, bias2)
    out_nhwc = jax.block_until_ready(out_nhwc)

    ref_nhwc = ref_forward(x_nhwc, w1_hwio, w2_hwio,
                           (g1, b1, m1, v1), (g2, b2, m2, v2), eps)
    ref_nhwc = jax.block_until_ready(ref_nhwc)

    assert out_nhwc.shape == (B, H, W, planes)
    # tolerance sized for bf16 MXU inputs (f32 accumulation) vs a pure-f32 reference
    if not jnp.allclose(out_nhwc, ref_nhwc, rtol=5e-2, atol=5e-2):
        raise AssertionError("Pallas kernel does not match JAX reference")

    # back to PyTorch NCHW layout for the final result
    out_nchw = jnp.transpose(out_nhwc, (0, 3, 1, 2))
    jax.block_until_ready(out_nchw)
    print("KERNEL_OK")
</pallas_src>

<mosaic_0001>
module attributes {stable_mosaic.version = 11 : i64} {
  func.func @kernel(%arg0: i32, %arg1: memref<1x16x128xf32, #tpu.memory_space<vmem>>, %arg2: memref<3x128x128xbf16, #tpu.memory_space<vmem>>, %arg3: memref<1x128xf32, #tpu.memory_space<vmem>>, %arg4: memref<1x128xf32, #tpu.memory_space<vmem>>, %arg5: memref<3x128x128xbf16, #tpu.memory_space<vmem>>, %arg6: memref<1x128xf32, #tpu.memory_space<vmem>>, %arg7: memref<1x128xf32, #tpu.memory_space<vmem>>, %arg8: memref<1x16x128xf32, #tpu.memory_space<vmem>>, %arg9: memref<18x128xbf16, #tpu.memory_space<vmem>>, %arg10: memref<18x128xbf16, #tpu.memory_space<vmem>>) attributes {dimension_semantics = [#tpu.dimension_semantics<parallel>], iteration_bounds = array<i64: 2>, scalar_prefetch = 0 : i64, scratch_operands = 2 : i64, tpu.core_type = #tpu.core_type<tc>, window_params = [{transform_indices = @transform_0, window_bounds = array<i64: 1, 16, 128>}, {pipeline_mode = #tpu.pipeline_mode<synchronous>, transform_indices = @transform_1, window_bounds = array<i64: 3, 128, 128>}, {pipeline_mode = #tpu.pipeline_mode<synchronous>, transform_indices = @transform_2, window_bounds = array<i64: 1, 128>}, {pipeline_mode = #tpu.pipeline_mode<synchronous>, transform_indices = @transform_3, window_bounds = array<i64: 1, 128>}, {pipeline_mode = #tpu.pipeline_mode<synchronous>, transform_indices = @transform_4, window_bounds = array<i64: 3, 128, 128>}, {pipeline_mode = #tpu.pipeline_mode<synchronous>, transform_indices = @transform_5, window_bounds = array<i64: 1, 128>}, {pipeline_mode = #tpu.pipeline_mode<synchronous>, transform_indices = @transform_6, window_bounds = array<i64: 1, 128>}, {transform_indices = @transform_7, window_bounds = array<i64: 1, 16, 128>}]} {
    %cst = arith.constant 0.000000e+00 : bf16
    %0 = vector.broadcast %cst : bf16 to vector<1x128xbf16>
    %c0 = arith.constant 0 : index
    %c0_0 = arith.constant 0 : index
    %1 = vector.load %arg9[%c0, %c0_0] : memref<18x128xbf16, #tpu.memory_space<vmem>>, vector<1x128xbf16>
    tpu.vector_store %arg9[%c0, %c0_0], %0 {strides = array<i32>} : memref<18x128xbf16, #tpu.memory_space<vmem>>, vector<1x128xbf16>,
    %cst_1 = arith.constant 0.000000e+00 : bf16
    %2 = vector.broadcast %cst_1 : bf16 to vector<1x128xbf16>
    %c17 = arith.constant 17 : index
    %c0_2 = arith.constant 0 : index
    %3 = vector.load %arg9[%c17, %c0_2] : memref<18x128xbf16, #tpu.memory_space<vmem>>, vector<1x128xbf16>
    tpu.vector_store %arg9[%c17, %c0_2], %2 {strides = array<i32>} : memref<18x128xbf16, #tpu.memory_space<vmem>>, vector<1x128xbf16>,
    %c0_3 = arith.constant 0 : index
    %c0_4 = arith.constant 0 : index
    %c0_5 = arith.constant 0 : index
    %4 = vector.load %arg1[%c0_3, %c0_4, %c0_5] : memref<1x16x128xf32, #tpu.memory_space<vmem>>, vector<1x16x128xf32>
    %5 = vector.shape_cast %4 : vector<1x16x128xf32> to vector<16x128xf32>
    %6 = arith.truncf %5 : vector<16x128xf32> to vector<16x128xbf16>
    %c1 = arith.constant 1 : index
    %c0_6 = arith.constant 0 : index
    %7 = vector.load %arg9[%c1, %c0_6] : memref<18x128xbf16, #tpu.memory_space<vmem>>, vector<16x128xbf16>
    tpu.vector_store %arg9[%c1, %c0_6], %6 {strides = array<i32>} : memref<18x128xbf16, #tpu.memory_space<vmem>>, vector<16x128xbf16>,
    %c0_7 = arith.constant 0 : index
    %c0_8 = arith.constant 0 : index
    %8 = vector.load %arg9[%c0_7, %c0_8] : memref<18x128xbf16, #tpu.memory_space<vmem>>, vector<16x128xbf16>
    %c0_9 = arith.constant 0 : index
    %c0_10 = arith.constant 0 : index
    %c0_11 = arith.constant 0 : index
    %9 = vector.load %arg2[%c0_9, %c0_10, %c0_11] : memref<3x128x128xbf16, #tpu.memory_space<vmem>>, vector<1x128x128xbf16>
    %10 = vector.shape_cast %9 : vector<1x128x128xbf16> to vector<128x128xbf16>
    %cst_12 = arith.constant dense<0.000000e+00> : vector<16x128xf32>
    %11 = tpu.matmul %8, %10, %cst_12 {dimension_numbers = #tpu.dot_dimension_numbers<[1], [0], [0], [1], [0, 0, 1, 1], [], []>} : vector<16x128xbf16>, vector<128x128xbf16>, vector<16x128xf32> -> vector<16x128xf32>
    %c1_13 = arith.constant 1 : index
    %c0_14 = arith.constant 0 : index
    %12 = vector.load %arg9[%c1_13, %c0_14] : memref<18x128xbf16, #tpu.memory_space<vmem>>, vector<16x128xbf16>
    %c1_15 = arith.constant 1 : index
    %c0_16 = arith.constant 0 : index
    %c0_17 = arith.constant 0 : index
    %13 = vector.load %arg2[%c1_15, %c0_16, %c0_17] : memref<3x128x128xbf16, #tpu.memory_space<vmem>>, vector<1x128x128xbf16>
    %14 = vector.shape_cast %13 : vector<1x128x128xbf16> to vector<128x128xbf16>
    %cst_18 = arith.constant dense<0.000000e+00> : vector<16x128xf32>
    %15 = tpu.matmul %12, %14, %cst_18 {dimension_numbers = #tpu.dot_dimension_numbers<[1], [0], [0], [1], [0, 0, 1, 1], [], []>} : vector<16x128xbf16>, vector<128x128xbf16>, vector<16x128xf32> -> vector<16x128xf32>
    %16 = arith.addf %11, %15 : vector<16x128xf32>
    %c2 = arith.constant 2 : index
    %c0_19 = arith.constant 0 : index
    %17 = vector.load %arg9[%c2, %c0_19] : memref<18x128xbf16, #tpu.memory_space<vmem>>, vector<16x128xbf16>
    %c2_20 = arith.constant 2 : index
    %c0_21 = arith.constant 0 : index
    %c0_22 = arith.constant 0 : index
    %18 = vector.load %arg2[%c2_20, %c0_21, %c0_22] : memref<3x128x128xbf16, #tpu.memory_space<vmem>>, vector<1x128x128xbf16>
    %19 = vector.shape_cast %18 : vector<1x128x128xbf16> to vector<128x128xbf16>
    %cst_23 = arith.constant dense<0.000000e+00> : vector<16x128xf32>
    %20 = tpu.matmul %17, %19, %cst_23 {dimension_numbers = #tpu.dot_dimension_numbers<[1], [0], [0], [1], [0, 0, 1, 1], [], []>} : vector<16x128xbf16>, vector<128x128xbf16>, vector<16x128xf32> -> vector<16x128xf32>
    %21 = arith.addf %16, %20 : vector<16x128xf32>
    %c0_24 = arith.constant 0 : index
    %c0_25 = arith.constant 0 : index
    %22 = vector.load %arg3[%c0_24, %c0_25] : memref<1x128xf32, #tpu.memory_space<vmem>>, vector<1x128xf32>
    %23 = vector.broadcast %22 : vector<1x128xf32> to vector<16x128xf32>
    %24 = arith.mulf %21, %23 : vector<16x128xf32>
    %c0_26 = arith.constant 0 : index
    %c0_27 = arith.constant 0 : index
    %25 = vector.load %arg4[%c0_26, %c0_27] : memref<1x128xf32, #tpu.memory_space<vmem>>, vector<1x128xf32>
    %26 = vector.broadcast %25 : vector<1x128xf32> to vector<16x128xf32>
    %27 = arith.addf %24, %26 : vector<16x128xf32>
    %cst_28 = arith.constant 0.000000e+00 : f32
    %28 = vector.broadcast %cst_28 : f32 to vector<16x128xf32>
    %29 = arith.maximumf %27, %28 : vector<16x128xf32>
    %cst_29 = arith.constant 0.000000e+00 : bf16
    %30 = vector.broadcast %cst_29 : bf16 to vector<1x128xbf16>
    %c0_30 = arith.constant 0 : index
    %c0_31 = arith.constant 0 : index
    %31 = vector.load %arg10[%c0_30, %c0_31] : memref<18x128xbf16, #tpu.memory_space<vmem>>, vector<1x128xbf16>
    tpu.vector_store %arg10[%c0_30, %c0_31], %30 {strides = array<i32>} : memref<18x128xbf16, #tpu.memory_space<vmem>>, vector<1x128xbf16>,
    %cst_32 = arith.constant 0.000000e+00 : bf16
    %32 = vector.broadcast %cst_32 : bf16 to vector<1x128xbf16>
    %c17_33 = arith.constant 17 : index
    %c0_34 = arith.constant 0 : index
    %33 = vector.load %arg10[%c17_33, %c0_34] : memref<18x128xbf16, #tpu.memory_space<vmem>>, vector<1x128xbf16>
    tpu.vector_store %arg10[%c17_33, %c0_34], %32 {strides = array<i32>} : memref<18x128xbf16, #tpu.memory_space<vmem>>, vector<1x128xbf16>,
    %34 = arith.truncf %29 : vector<16x128xf32> to vector<16x128xbf16>
    %c1_35 = arith.constant 1 : index
    %c0_36 = arith.constant 0 : index
    %35 = vector.load %arg10[%c1_35, %c0_36] : memref<18x128xbf16, #tpu.memory_space<vmem>>, vector<16x128xbf16>
    tpu.vector_store %arg10[%c1_35, %c0_36], %34 {strides = array<i32>} : memref<18x128xbf16, #tpu.memory_space<vmem>>, vector<16x128xbf16>,
    %c0_37 = arith.constant 0 : index
    %c0_38 = arith.constant 0 : index
    %36 = vector.load %arg10[%c0_37, %c0_38] : memref<18x128xbf16, #tpu.memory_space<vmem>>, vector<16x128xbf16>
    %c0_39 = arith.constant 0 : index
    %c0_40 = arith.constant 0 : index
    %c0_41 = arith.constant 0 : index
    %37 = vector.load %arg5[%c0_39, %c0_40, %c0_41] : memref<3x128x128xbf16, #tpu.memory_space<vmem>>, vector<1x128x128xbf16>
    %38 = vector.shape_cast %37 : vector<1x128x128xbf16> to vector<128x128xbf16>
    %cst_42 = arith.constant dense<0.000000e+00> : vector<16x128xf32>
    %39 = tpu.matmul %36, %38, %cst_42 {dimension_numbers = #tpu.dot_dimension_numbers<[1], [0], [0], [1], [0, 0, 1, 1], [], []>} : vector<16x128xbf16>, vector<128x128xbf16>, vector<16x128xf32> -> vector<16x128xf32>
    %c1_43 = arith.constant 1 : index
    %c0_44 = arith.constant 0 : index
    %40 = vector.load %arg10[%c1_43, %c0_44] : memref<18x128xbf16, #tpu.memory_space<vmem>>, vector<16x128xbf16>
    %c1_45 = arith.constant 1 : index
    %c0_46 = arith.constant 0 : index
    %c0_47 = arith.constant 0 : index
    %41 = vector.load %arg5[%c1_45, %c0_46, %c0_47] : memref<3x128x128xbf16, #tpu.memory_space<vmem>>, vector<1x128x128xbf16>
    %42 = vector.shape_cast %41 : vector<1x128x128xbf16> to vector<128x128xbf16>
    %cst_48 = arith.constant dense<0.000000e+00> : vector<16x128xf32>
    %43 = tpu.matmul %40, %42, %cst_48 {dimension_numbers = #tpu.dot_dimension_numbers<[1], [0], [0], [1], [0, 0, 1, 1], [], []>} : vector<16x128xbf16>, vector<128x128xbf16>, vector<16x128xf32> -> vector<16x128xf32>
    %44 = arith.addf %39, %43 : vector<16x128xf32>
    %c2_49 = arith.constant 2 : index
    %c0_50 = arith.constant 0 : index
    %45 = vector.load %arg10[%c2_49, %c0_50] : memref<18x128xbf16, #tpu.memory_space<vmem>>, vector<16x128xbf16>
    %c2_51 = arith.constant 2 : index
    %c0_52 = arith.constant 0 : index
    %c0_53 = arith.constant 0 : index
    %46 = vector.load %arg5[%c2_51, %c0_52, %c0_53] : memref<3x128x128xbf16, #tpu.memory_space<vmem>>, vector<1x128x128xbf16>
    %47 = vector.shape_cast %46 : vector<1x128x128xbf16> to vector<128x128xbf16>
    %cst_54 = arith.constant dense<0.000000e+00> : vector<16x128xf32>
    %48 = tpu.matmul %45, %47, %cst_54 {dimension_numbers = #tpu.dot_dimension_numbers<[1], [0], [0], [1], [0, 0, 1, 1], [], []>} : vector<16x128xbf16>, vector<128x128xbf16>, vector<16x128xf32> -> vector<16x128xf32>
    %49 = arith.addf %44, %48 : vector<16x128xf32>
    %c0_55 = arith.constant 0 : index
    %c0_56 = arith.constant 0 : index
    %50 = vector.load %arg6[%c0_55, %c0_56] : memref<1x128xf32, #tpu.memory_space<vmem>>, vector<1x128xf32>
    %51 = vector.broadcast %50 : vector<1x128xf32> to vector<16x128xf32>
    %52 = arith.mulf %49, %51 : vector<16x128xf32>
    %c0_57 = arith.constant 0 : index
    %c0_58 = arith.constant 0 : index
    %53 = vector.load %arg7[%c0_57, %c0_58] : memref<1x128xf32, #tpu.memory_space<vmem>>, vector<1x128xf32>
    %54 = vector.broadcast %53 : vector<1x128xf32> to vector<16x128xf32>
    %55 = arith.addf %52, %54 : vector<16x128xf32>
    %c0_59 = arith.constant 0 : index
    %c0_60 = arith.constant 0 : index
    %c0_61 = arith.constant 0 : index
    %56 = vector.load %arg1[%c0_59, %c0_60, %c0_61] : memref<1x16x128xf32, #tpu.memory_space<vmem>>, vector<1x16x128xf32>
    %57 = vector.shape_cast %56 : vector<1x16x128xf32> to vector<16x128xf32>
    %58 = arith.addf %55, %57 : vector<16x128xf32>
    %cst_62 = arith.constant 0.000000e+00 : f32
    %59 = vector.broadcast %cst_62 : f32 to vector<16x128xf32>
    %60 = arith.maximumf %58, %59 : vector<16x128xf32>
    %c0_63 = arith.constant 0 : index
    %c0_64 = arith.constant 0 : index
    %c0_65 = arith.constant 0 : index
    %61 = vector.load %arg8[%c0_63, %c0_64, %c0_65] : memref<1x16x128xf32, #tpu.memory_space<vmem>>, vector<1x16x128xf32>
    %62 = vector.shape_cast %61 : vector<1x16x128xf32> to vector<16x128xf32>
    %63 = vector.shape_cast %60 : vector<16x128xf32> to vector<1x16x128xf32>
    tpu.vector_store %arg8[%c0_63, %c0_64, %c0_65], %63 {strides = array<i32>} : memref<1x16x128xf32, #tpu.memory_space<vmem>>, vector<1x16x128xf32>,
    return
  }
  func.func @transform_0(%arg0: i32) -> (i32, i32, i32) {
    %c0_i32 = arith.constant 0 : i32
    %c0_i32_0 = arith.constant 0 : i32
    %c0_i32_1 = arith.constant 0 : i32
    return %arg0, %c0_i32, %c0_i32_0 : i32, i32, i32
  }
  func.func @transform_1(%arg0: i32) -> (i32, i32, i32) {
    %c0_i32 = arith.constant 0 : i32
    %c0_i32_0 = arith.constant 0 : i32
    %c0_i32_1 = arith.constant 0 : i32
    %c0_i32_2 = arith.constant 0 : i32
    return %c0_i32, %c0_i32_0, %c0_i32_1 : i32, i32, i32
  }
  func.func @transform_2(%arg0: i32) -> (i32, i32) {
    %c0_i32 = arith.constant 0 : i32
    %c0_i32_0 = arith.constant 0 : i32
    %c0_i32_1 = arith.constant 0 : i32
    return %c0_i32, %c0_i32_0 : i32, i32
  }
  func.func @transform_3(%arg0: i32) -> (i32, i32) {
    %c0_i32 = arith.constant 0 : i32
    %c0_i32_0 = arith.constant 0 : i32
    %c0_i32_1 = arith.constant 0 : i32
    return %c0_i32, %c0_i32_0 : i32, i32
  }
  func.func @transform_4(%arg0: i32) -> (i32, i32, i32) {
    %c0_i32 = arith.constant 0 : i32
    %c0_i32_0 = arith.constant 0 : i32
    %c0_i32_1 = arith.constant 0 : i32
    %c0_i32_2 = arith.constant 0 : i32
    return %c0_i32, %c0_i32_0, %c0_i32_1 : i32, i32, i32
  }
  func.func @transform_5(%arg0: i32) -> (i32, i32) {
    %c0_i32 = arith.constant 0 : i32
    %c0_i32_0 = arith.constant 0 : i32
    %c0_i32_1 = arith.constant 0 : i32
    return %c0_i32, %c0_i32_0 : i32, i32
  }
  func.func @transform_6(%arg0: i32) -> (i32, i32) {
    %c0_i32 = arith.constant 0 : i32
    %c0_i32_0 = arith.constant 0 : i32
    %c0_i32_1 = arith.constant 0 : i32
    return %c0_i32, %c0_i32_0 : i32, i32
  }
  func.func @transform_7(%arg0: i32) -> (i32, i32, i32) {
    %c0_i32 = arith.constant 0 : i32
    %c0_i32_0 = arith.constant 0 : i32
    %c0_i32_1 = arith.constant 0 : i32
    return %arg0, %c0_i32, %c0_i32_0 : i32, i32, i32
  }
}

</mosaic_0001>

<llo_original>
// kernel: tpu_custom_call.1
$region0: #{tpu_custom_call.1}
  #allocation0 [shape = 'u32[]', space=smem, size = 0x4, offset = 0x4, fixed_abs, tag = 'smem constant byte address 0x4 - core index']
  #allocation1 [shape = 'u32[144,128]{1,0:T(1,128)}', space=vmem, size = 0x12000, scoped, tag = 'internal scratch']
  #allocation2 [shape = 'bf16[18,128]{1,0:T(8,128)(2,1)}', space=vmem, size = 0x1800, scoped, tag = 'scratch operand']
  #allocation3 [shape = 'bf16[18,128]{1,0:T(8,128)(2,1)}', space=vmem, size = 0x1800, scoped, tag = 'scratch operand']
  %s0 = inlined_call_operand.hbm [shape: f32[2,16,128], index: 0, kind: input, shape index: {}]
  %s1 = inlined_call_operand.hbm [shape: bf16[3,128,128], index: 1, kind: input, shape index: {}]
  %s2 = inlined_call_operand.vmem [shape: f32[1,128], index: 2, kind: input, shape index: {}]
  %s3 = inlined_call_operand.vmem [shape: f32[1,128], index: 3, kind: input, shape index: {}]
  %s4 = inlined_call_operand.hbm [shape: bf16[3,128,128], index: 4, kind: input, shape index: {}]
  %s5 = inlined_call_operand.vmem [shape: f32[1,128], index: 5, kind: input, shape index: {}]
  %s6 = inlined_call_operand.vmem [shape: f32[1,128], index: 6, kind: input, shape index: {}]
  %s7 = inlined_call_operand.hbm [shape: f32[2,16,128], index: 7, kind: output, shape index: {}]
  %s8 = sld [smem:[#allocation0]]
  $region73: #{tpu_custom_call.1} parent=0
    _
  %s10 = ssub.s32 1, %s8
  %s11 = scalar_select 0, %s10, %s8
  $region1: #{tpu_custom_call.1} parent=0
    #allocation4 [shape = 'u8[16384]{0}', space=vmem, size = 0x4000, scoped, tag = 'input window, operand 0']
    #allocation5 [shape = 's32[2]{0}', space=sflag, size = 0x8, scoped, tag = 'scoped memory for tpu_custom_call.1']
    #allocation6 [shape = 's32[2]{0}', space=sflag, size = 0x8, scoped, tag = 'scoped memory for tpu_custom_call.1']
    #allocation7 [shape = 'u8[98304]{0}', space=vmem, size = 0x18000, scoped, tag = 'input window, operand 1, single buffered']
    #allocation8 [shape = 's32[1]{0}', space=sflag, size = 0x4, scoped, tag = 'scoped memory for tpu_custom_call.1']
    #allocation9 [shape = 'u8[98304]{0}', space=vmem, size = 0x18000, scoped, tag = 'input window, operand 4, single buffered']
    #allocation10 [shape = 'u8[16384]{0}', space=vmem, size = 0x4000, scoped, tag = 'output window, operand 0']
    %12 = vsyncpa [#allocation5], 0
    %s13 = scalar_lea.sflag [#allocation5], 1
    %14 = vsyncpa %s13, 0
    %15 = vsyncpa [#allocation8], 0
    %16 = vsyncpa [#allocation6], 0
    %s17 = scalar_lea.sflag [#allocation6], 1
    %18 = vsyncpa %s17, 0
    loop: start=0, step=1, limit=4
    $region2: #{tpu_custom_call.1} parent=1 // loop_pre_header
      _
    $region3: #{tpu_custom_call.1} parent=1 // loop_header
      %s20 = sphi 0, %s24
      %p21 = scmp.ge.s32.totalorder %s20, 4
      %s30 = sphi 0, %s32
      %s33 = sphi 0, %s30
      %s34 = sphi 0, %s33
      %s50 = sphi 0, %s34
      %s54 = sphi 0, %s54
      %s56 = sphi 0, %s54
      %s57 = sphi 0, %s56
      %s71 = sphi 0, %s57
      %s75 = sphi 0, %s75
      %s77 = sphi 0, %s75
      %s78 = sphi 0, %s77
      %s92 = sphi 0, %s78
      %s96 = sphi 0, %s96
      %s98 = sphi 0, %s96
      %s99 = sphi 0, %s98
      %s113 = sphi 0, %s99
      %s117 = sphi 0, %s117
      %s119 = sphi 0, %s117
      %s120 = sphi 0, %s119
      %s134 = sphi 0, %s120
      %s138 = sphi 0, %s138
      %s140 = sphi 0, %s138
      %s141 = sphi 0, %s140
      %s155 = sphi 0, %s141
      %s159 = sphi 0, %s159
      %s161 = sphi 0, %s159
      %s162 = sphi 0, %s161
      %s176 = sphi 0, %s162
      %s182 = sphi 0, %s184
      %s185 = sphi 0, %s182
      %s186 = sphi 0, %s185
      %s202 = sphi 0, %s186
    $region4: #{tpu_custom_call.1} parent=1 // loop_header_branch
      %23 = sbr.rel (%p21) target = $region8
    $region5: #{tpu_custom_call.1} parent=1 // loop_body
      %s25 = ssub.s32 %s20, 1
      %s26 = ssub.s32 %s20, 2
      %s27 = sadd.s32 %s20, 1
      %s28 = ssub.s32 %s20, %s27
      %p29 = scmp.eq.s32.totalorder %s28, 0
      %s31 = sadd.s32 %s30, 1
      %s32 = scalar_select %p29, %s30, %s31
      %p35 = pneg %p29
      %p36 = scmp.eq.s32.totalorder %s20, 1
      %p37 = por %p35, %p36
      %p38 = scmp.ne.s32.totalorder %s30, %s33
      %p39 = scmp.eq.s32.totalorder %s20, 0
      %p40 = por %p38, %p39
      %p41 = scmp.ne.s32.totalorder %s30, %s33
      %p42 = scmp.eq.s32.totalorder %s25, 1
      %p43 = por %p41, %p42
      %p44 = scmp.ne.s32.totalorder %s33, %s34
      %p45 = scmp.eq.s32.totalorder %s25, 0
      %p46 = por %p44, %p45
      %p47 = scmp.ne.s32.totalorder %s33, %s34
      %p48 = scmp.eq.s32.totalorder %s26, 1
      %p49 = por %p47, %p48
      %p51 = scmp.ne.s32.totalorder %s34, %s50
      %p52 = scmp.eq.s32.totalorder %s26, 0
      %p53 = por %p51, %p52
      %s55 = sadd.s32 %s54, 1
      %p58 = scmp.eq.s32.totalorder %s20, 1
      %p59 = scmp.ne.s32.totalorder %s54, %s56
      %p60 = scmp.eq.s32.totalorder %s20, 0
      %p61 = por %p59, %p60
      %p62 = scmp.ne.s32.totalorder %s54, %s56
      %p63 = scmp.eq.s32.totalorder %s25, 1
      %p64 = por %p62, %p63
      %p65 = scmp.ne.s32.totalorder %s56, %s57
      %p66 = scmp.eq.s32.totalorder %s25, 0
      %p67 = por %p65, %p66
      %p68 = scmp.ne.s32.totalorder %s56, %s57
      %p69 = scmp.eq.s32.totalorder %s26, 1
      %p70 = por %p68, %p69
      %p72 = scmp.ne.s32.totalorder %s57, %s71
      %p73 = scmp.eq.s32.totalorder %s26, 0
      %p74 = por %p72, %p73
      %s76 = sadd.s32 %s75, 1
      %p79 = scmp.eq.s32.totalorder %s20, 1
      %p80 = scmp.ne.s32.totalorder %s75, %s77
      %p81 = scmp.eq.s32.totalorder %s20, 0
      %p82 = por %p80, %p81
      %p83 = scmp.ne.s32.totalorder %s75, %s77
      %p84 = scmp.eq.s32.totalorder %s25, 1
      %p85 = por %p83, %p84
      %p86 = scmp.ne.s32.totalorder %s77, %s78
      %p87 = scmp.eq.s32.totalorder %s25, 0
      %p88 = por %p86, %p87
      %p89 = scmp.ne.s32.totalorder %s77, %s78
      %p90 = scmp.eq.s32.totalorder %s26, 1
      %p91 = por %p89, %p90
      %p93 = scmp.ne.s32.totalorder %s78, %s92
      %p94 = scmp.eq.s32.totalorder %s26, 0
      %p95 = por %p93, %p94
      %s97 = sadd.s32 %s96, 1
      %p100 = scmp.eq.s32.totalorder %s20, 1
      %p101 = scmp.ne.s32.totalorder %s96, %s98
      %p102 = scmp.eq.s32.totalorder %s20, 0
      %p103 = por %p101, %p102
      %p104 = scmp.ne.s32.totalorder %s96, %s98
      %p105 = scmp.eq.s32.totalorder %s25, 1
      %p106 = por %p104, %p105
      %p107 = scmp.ne.s32.totalorder %s98, %s99
      %p108 = scmp.eq.s32.totalorder %s25, 0
      %p109 = por %p107, %p108
      %p110 = scmp.ne.s32.totalorder %s98, %s99
      %p111 = scmp.eq.s32.totalorder %s26, 1
      %p112 = por %p110, %p111
      %p114 = scmp.ne.s32.totalorder %s99, %s113
      %p115 = scmp.eq.s32.totalorder %s26, 0
      %p116 = por %p114, %p115
      %s118 = sadd.s32 %s117, 1
      %p121 = scmp.eq.s32.totalorder %s20, 1
      %p122 = scmp.ne.s32.totalorder %s117, %s119
      %p123 = scmp.eq.s32.totalorder %s20, 0
      %p124 = por %p122, %p123
      %p125 = scmp.ne.s32.totalorder %s117, %s119
      %p126 = scmp.eq.s32.totalorder %s25, 1
      %p127 = por %p125, %p126
      %p128 = scmp.ne.s32.totalorder %s119, %s120
      %p129 = scmp.eq.s32.totalorder %s25, 0
      %p130 = por %p128, %p129
      %p131 = scmp.ne.s32.totalorder %s119, %s120
      %p132 = scmp.eq.s32.totalorder %s26, 1
      %p133 = por %p131, %p132
      %p135 = scmp.ne.s32.totalorder %s120, %s134
      %p136 = scmp.eq.s32.totalorder %s26, 0
      %p137 = por %p135, %p136
      %s139 = sadd.s32 %s138, 1
      %p142 = scmp.eq.s32.totalorder %s20, 1
      %p143 = scmp.ne.s32.totalorder %s138, %s140
      %p144 = scmp.eq.s32.totalorder %s20, 0
      %p145 = por %p143, %p144
      %p146 = scmp.ne.s32.totalorder %s138, %s140
      %p147 = scmp.eq.s32.totalorder %s25, 1
      %p148 = por %p146, %p147
      %p149 = scmp.ne.s32.totalorder %s140, %s141
      %p150 = scmp.eq.s32.totalorder %s25, 0
      %p151 = por %p149, %p150
      %p152 = scmp.ne.s32.totalorder %s140, %s141
      %p153 = scmp.eq.s32.totalorder %s26, 1
      %p154 = por %p152, %p153
      %p156 = scmp.ne.s32.totalorder %s141, %s155
      %p157 = scmp.eq.s32.totalorder %s26, 0
      %p158 = por %p156, %p157
      %s160 = sadd.s32 %s159, 1
      %p163 = scmp.eq.s32.totalorder %s20, 1
      %p164 = scmp.ne.s32.totalorder %s159, %s161
      %p165 = scmp.eq.s32.totalorder %s20, 0
      %p166 = por %p164, %p165
      %p167 = scmp.ne.s32.totalorder %s159, %s161
      %p168 = scmp.eq.s32.totalorder %s25, 1
      %p169 = por %p167, %p168
      %p170 = scmp.ne.s32.totalorder %s161, %s162
      %p171 = scmp.eq.s32.totalorder %s25, 0
      %p172 = por %p170, %p171
      %p173 = scmp.ne.s32.totalorder %s161, %s162
      %p174 = scmp.eq.s32.totalorder %s26, 1
      %p175 = por %p173, %p174
      %p177 = scmp.ne.s32.totalorder %s162, %s176
      %p178 = scmp.eq.s32.totalorder %s26, 0
      %p179 = por %p177, %p178
      %s180 = ssub.s32 %s20, %s27
      %p181 = scmp.eq.s32.totalorder %s180, 0
      %s183 = sadd.s32 %s182, 1
      %s184 = scalar_select %p181, %s182, %s183
      %p187 = pneg %p181
      %p188 = scmp.eq.s32.totalorder %s20, 1
      %p189 = por %p187, %p188
      %p190 = scmp.ne.s32.totalorder %s182, %s185
      %p191 = scmp.eq.s32.totalorder %s20, 0
      %p192 = por %p190, %p191
      %p193 = scmp.ne.s32.totalorder %s182, %s185
      %p194 = scmp.eq.s32.totalorder %s25, 1
      %p195 = por %p193, %p194
      %p196 = scmp.ne.s32.totalorder %s185, %s186
      %p197 = scmp.eq.s32.totalorder %s25, 0
      %p198 = por %p196, %p197
      %p199 = scmp.ne.s32.totalorder %s185, %s186
      %p200 = scmp.eq.s32.totalorder %s26, 1
      %p201 = por %p199, %p200
      %p203 = scmp.ne.s32.totalorder %s186, %s202
      %p204 = scmp.eq.s32.totalorder %s26, 0
      %p205 = por %p203, %p204
      %p206 = scmp.le.s32.totalorder 1, %s20
      %p207 = scmp.lt.s32.totalorder %s20, 3
      %p208 = pnand %p206, %p207
      %p209 = pneg %p208
      // Predicated region
      $region9: #{tpu_custom_call.1} parent=5 // pred_check
        _
      $region10: #{tpu_custom_call.1} parent=5 // pred_check_branch
        %211 = sbr.rel (%p208) target = $region12
      $region11: #{tpu_custom_call.1} parent=5 // pred_region
        %s212 = ssub.s32 %s20, 1
        // Predicated region
        $region13: #{tpu_custom_call.1} parent=11 // pred_check
          %p213 = pneg %p67
        $region14: #{tpu_custom_call.1} parent=11 // pred_check_branch
          %215 = sbr.rel (%p213) target = $region16
        $region15: #{tpu_custom_call.1} parent=11 // pred_region
          %s217 = ssub.s32 3072, 3072
          %218 = vsyncadd [#allocation8], %s217
          %s219 = sshll.u32 [#allocation7], 4
          %s220 = int_to_ptr.vmem [resolvable:$true] %s219
          %225 = dma.hbm_to_vmem [thread:$0]  %s1, 3072, %s220, [#allocation8], 64, 64, 4
        $region16: #{tpu_custom_call.1} parent=11 // pred_fallthru
          _
        // Predicated region
        $region17: #{tpu_custom_call.1} parent=11 // pred_check
          %p226 = pneg %p88
        $region18: #{tpu_custom_call.1} parent=11 // pred_check_branch
          %228 = sbr.rel (%p226) target = $region20
        $region19: #{tpu_custom_call.1} parent=11 // pred_region
          _
        $region20: #{tpu_custom_call.1} parent=11 // pred_fallthru
          _
        // Predicated region
        $region21: #{tpu_custom_call.1} parent=11 // pred_check
          %p229 = pneg %p109
        $region22: #{tpu_custom_call.1} parent=11 // pred_check_branch
          %231 = sbr.rel (%p229) target = $region24
        $region23: #{tpu_custom_call.1} parent=11 // pred_region
          _
        $region24: #{tpu_custom_call.1} parent=11 // pred_fallthru
          _
        // Predicated region
        $region25: #{tpu_custom_call.1} parent=11 // pred_check
          %p232 = pneg %p130
        $region26: #{tpu_custom_call.1} parent=11 // pred_check_branch
          %234 = sbr.rel (%p232) target = $region28
        $region27: #{tpu_custom_call.1} parent=11 // pred_region
          %s236 = ssub.s32 3072, 3072
          %237 = vsyncadd [#allocation8], %s236
          %s238 = sshll.u32 [#allocation9], 4
          %s239 = int_to_ptr.vmem [resolvable:$true] %s238
          %244 = dma.hbm_to_vmem [thread:$0]  %s4, 3072, %s239, [#allocation8], 64, 64, 4
        $region28: #{tpu_custom_call.1} parent=11 // pred_fallthru
          _
        // Predicated region
        $region29: #{tpu_custom_call.1} parent=11 // pred_check
          %p245 = pneg %p151
        $region30: #{tpu_custom_call.1} parent=11 // pred_check_branch
          %247 = sbr.rel (%p245) target = $region32
        $region31: #{tpu_custom_call.1} parent=11 // pred_region
          _
        $region32: #{tpu_custom_call.1} parent=11 // pred_fallthru
          _
        // Predicated region
        $region33: #{tpu_custom_call.1} parent=11 // pred_check
          %p248 = pneg %p172
        $region34: #{tpu_custom_call.1} parent=11 // pred_check_branch
          %250 = sbr.rel (%p248) target = $region36
        $region35: #{tpu_custom_call.1} parent=11 // pred_region
          _
        $region36: #{tpu_custom_call.1} parent=11 // pred_fallthru
          _
      $region12: #{tpu_custom_call.1} parent=5 // pred_fallthru
        _
      %p251 = scmp.lt.s32.totalorder %s20, 2
      // Predicated region
      $region37: #{tpu_custom_call.1} parent=5 // pred_check
        %p252 = pneg %p251
      $region38: #{tpu_custom_call.1} parent=5 // pred_check_branch
        %254 = sbr.rel (%p252) target = $region40
      $region39: #{tpu_custom_call.1} parent=5 // pred_region
        // Predicated region
        $region41: #{tpu_custom_call.1} parent=39 // pred_check
          %p255 = pneg %p40
        $region42: #{tpu_custom_call.1} parent=39 // pred_check_branch
          %257 = sbr.rel (%p255) target = $region44
        $region43: #{tpu_custom_call.1} parent=39 // pred_region
          %s258 = sand.u32 %s30, 1
          %s259 = scalar_lea.sflag [#allocation5], %s258
          %s260 = sand.u32 %s30, 1
          %s261 = smul.addr %s260, 16
          %s262 = scalar_lea.vmem [#allocation4], %s261
          %s264 = ssub.s32 256, 256
          %265 = vsyncadd %s259, %s264
          %s266 = smul.addr %s20, 2
          %s267 = smul.addr %s266, 128
          %s268 = scalar_lea.hbm %s0, %s267
          %s269 = sshll.u32 %s262, 4
          %s270 = int_to_ptr.vmem [resolvable:$true] %s269
          %275 = dma.hbm_to_vmem [thread:$0]  %s268, 256, %s270, %s259, 128, 128, 8
        $region44: #{tpu_custom_call.1} parent=39 // pred_fallthru
          _
      $region40: #{tpu_custom_call.1} parent=5 // pred_fallthru
        _
      %p276 = scmp.le.s32.totalorder 1, %s20
      %p277 = scmp.lt.s32.totalorder %s20, 3
      %p278 = pnand %p276, %p277
      %p279 = pneg %p278
      // Predicated region
      $region45: #{tpu_custom_call.1} parent=5 // pred_check
        _
      $region46: #{tpu_custom_call.1} parent=5 // pred_check_branch
        %281 = sbr.rel (%p278) target = $region48
      $region47: #{tpu_custom_call.1} parent=5 // pred_region
        %s282 = ssub.s32 %s20, 1
        %s283 = sand.u32 %s33, 1
        %s284 = scalar_lea.sflag [#allocation5], %s283
        %s285 = sand.u32 %s33, 1
        %s286 = smul.addr %s285, 16
        %s287 = scalar_lea.vmem [#allocation4], %s286
        // Predicated region
        $region49: #{tpu_custom_call.1} parent=47 // pred_check
          %p288 = pneg %p46
        $region50: #{tpu_custom_call.1} parent=47 // pred_check_branch
          %290 = sbr.rel (%p288) target = $region52
        $region51: #{tpu_custom_call.1} parent=47 // pred_region
          %291 = dma.done %s284, 256
        $region52: #{tpu_custom_call.1} parent=47 // pred_fallthru
          _
        // Predicated region
        $region53: #{tpu_custom_call.1} parent=47 // pred_check
          %p292 = pneg %p67
        $region54: #{tpu_custom_call.1} parent=47 // pred_check_branch
          %294 = sbr.rel (%p292) target = $region56
        $region55: #{tpu_custom_call.1} parent=47 // pred_region
          %295 = dma.done [#allocation8], 3072
        $region56: #{tpu_custom_call.1} parent=47 // pred_fallthru
          _
        // Predicated region
        $region57: #{tpu_custom_call.1} parent=47 // pred_check
          %p296 = pneg %p130
        $region58: #{tpu_custom_call.1} parent=47 // pred_check_branch
          %298 = sbr.rel (%p296) target = $region60
        $region59: #{tpu_custom_call.1} parent=47 // pred_region
          %299 = dma.done [#allocation8], 3072
        $region60: #{tpu_custom_call.1} parent=47 // pred_fallthru
          _
        %s300 = sand.u32 %s33, 1
        %s301 = scalar_lea.sflag [#allocation5], %s300
        %s302 = sand.u32 %s33, 1
        %s303 = smul.addr %s302, 16
        %s304 = scalar_lea.vmem [#allocation4], %s303
        %p305 = pneg %p46
        %p306 = pneg %p43
        %p307 = pneg %p67
        %p308 = pneg %p64
        %p309 = pneg %p88
        %p310 = pneg %p85
        %p311 = pneg %p109
        %p312 = pneg %p106
        %p313 = pneg %p130
        %p314 = pneg %p127
        %p315 = pneg %p151
        %p316 = pneg %p148
        %p317 = pneg %p172
        %p318 = pneg %p169
        %p319 = pneg %p198
        %p320 = pneg %p195
        %s321 = sand.u32 %s185, 1
        %s322 = scalar_lea.sflag [#allocation6], %s321
        %s323 = sand.u32 %s185, 1
        %s324 = smul.addr %s323, 16
        %s325 = scalar_lea.vmem [#allocation10], %s324
        %vm327 = vcmask 1040384
        %vm328 = vsmask.f32 256
        %vm329 = vmand %vm327, %vm328
        %v330 = vld [vmem:[#allocation2] sm:$0x1]
        %v331 = vsel %vm329, 0, %v330
        %332 = vst [vmem:[#allocation2] sm:$0x1] %v331
        %vm333 = vsmask.f32 7938
        %vm334 = vmand %vm327, %vm333
        %v335 = vld [vmem:[#allocation2 + $0x8] sm:$0x1]
        %v336 = vsel %vm334, 0, %v335
        %337 = vst [vmem:[#allocation2 + $0x8] sm:$0x1] %v336
        %v338 = vld [vmem:[%s287] sm:$0xff]
        %v339 = vld [vmem:[%s287 + $0x8] sm:$0xff]
        %v340 = vpack.c.bf16 %v339, %v338
        %v342 = vunpack.c.l.b16 %v340
        %v343 = vunpack.c.h.b16 %v340
        %v344 = vpack.c.b16 %v342, %v342
        %v345 = vpack.c.b16 %v343, %v343
        %vm346 = vsmask.f32 4368
        %vm347 = vmor %vm328, %vm346
        %v349 = vshrl.u32 %v344, 16
        %v351 = vrot.slane %v349, 7
        %v352 = vshll.u32 %v344, 16
        %v354 = vor.u32 %v351, %v352
        %v355 = vrot.slane %v351, 4
        %v357 = vshrl.u32 %v345, 16
        %v359 = vrot.slane %v357, 7
        %v360 = vshll.u32 %v345, 16
        %v362 = vor.u32 %v359, %v360
        %v363 = vsel %vm347, %v355, %v362
        %v364 = vrot.slane %v359, 4
        %vm368 = vcmask 1043456
        %vm369 = vmand %vm368, %vm333
        %v370 = vld [vmem:[#allocation2] sm:$0xf]
        %v371 = vsel %vm369, %v354, %v370
        %372 = vst [vmem:[#allocation2] sm:$0xf] %v371
        %373 = vst [vmem:[#allocation2 + $0x4] sm:$0xf] %v363
        %v374 = vld [vmem:[#allocation2 + $0x8] sm:$0x1]
        %v375 = vsel %vm329, %v364, %v374
        %376 = vst [vmem:[#allocation2 + $0x8] sm:$0x1] %v375
        %v377 = vld [vmem:[#allocation2] sm:$0xf]
        %v378 = vld [vmem:[#allocation2 + $0x4] sm:$0xf]
        %v379 = vld [vmem:[#allocation7] sm:$0xf]
        %v380 = vld [vmem:[#allocation7 + $0x4] sm:$0xf]
        %v381 = vld [vmem:[#allocation7 + $0x8] sm:$0xf]
        %v382 = vld [vmem:[#allocation7 + $0xc] sm:$0xf]
        %v383 = vld [vmem:[#allocation7 + $0x10] sm:$0xf]
        %v384 = vld [vmem:[#allocation7 + $0x14] sm:$0xf]
        %v385 = vld [vmem:[#allocation7 + $0x18] sm:$0xf]
        %v386 = vld [vmem:[#allocation7 + $0x1c] sm:$0xf]
        %v387 = vld [vmem:[#allocation7 + $0x20] sm:$0xf]
        %v388 = vld [vmem:[#allocation7 + $0x24] sm:$0xf]
        %v389 = vld [vmem:[#allocation7 + $0x28] sm:$0xf]
        %v390 = vld [vmem:[#allocation7 + $0x2c] sm:$0xf]
        %v391 = vld [vmem:[#allocation7 + $0x30] sm:$0xf]
        %v392 = vld [vmem:[#allocation7 + $0x34] sm:$0xf]
        %v393 = vld [vmem:[#allocation7 + $0x38] sm:$0xf]
        %v394 = vld [vmem:[#allocation7 + $0x3c] sm:$0xf]
        %v395 = vld [vmem:[#allocation2 + $0x8] sm:$0x1]
        %s396 = scalar_lea.vmem [#allocation7], 64
        %v397 = vld [vmem:[%s396] sm:$0xf]
        %v398 = vld [vmem:[%s396 + $0x4] sm:$0xf]
        %v399 = vld [vmem:[%s396 + $0x8] sm:$0xf]
        %v400 = vld [vmem:[%s396 + $0xc] sm:$0xf]
        %v401 = vld [vmem:[%s396 + $0x10] sm:$0xf]
        %v402 = vld [vmem:[%s396 + $0x14] sm:$0xf]
        %v403 = vld [vmem:[%s396 + $0x18] sm:$0xf]
        %v404 = vld [vmem:[%s396 + $0x1c] sm:$0xf]
        %v405 = vld [vmem:[%s396 + $0x20] sm:$0xf]
        %v406 = vld [vmem:[%s396 + $0x24] sm:$0xf]
        %v407 = vld [vmem:[%s396 + $0x28] sm:$0xf]
        %v408 = vld [vmem:[%s396 + $0x2c] sm:$0xf]
        %v409 = vld [vmem:[%s396 + $0x30] sm:$0xf]
        %v410 = vld [vmem:[%s396 + $0x34] sm:$0xf]
        %v411 = vld [vmem:[%s396 + $0x38] sm:$0xf]
        %v412 = vld [vmem:[%s396 + $0x3c] sm:$0xf]
        %v416 = vunpack.c.l.b16 %v377
        %v417 = vunpack.c.l.b16 %v378
        %v418 = vunpack.c.l.b16 %v395
        %v419 = vpack.c.b16 %v417, %v416
        %v420 = vpack.c.b16 %v418, %v418
        %vm421 = vsmask.f32 7424
        %v423 = vshrl.u32 %v419, 16
        %v425 = vshll.u32 %v419, 16
        %v427 = vrot.slane %v425, 1
        %v428 = vor.u32 %v423, %v427
        %v430 = vshll.u32 %v420, 16
        %v432 = vrot.slane %v430, 1
        %v433 = vsel %vm421, %v428, %v432
        %v451 = vunpack.c.l.b16 %v397
        %v452 = vunpack.c.l.b16 %v398
        %v453 = vunpack.c.l.b16 %v399
        %v454 = vunpack.c.l.b16 %v400
        %v455 = vunpack.c.l.b16 %v401
        %v456 = vunpack.c.l.b16 %v402
        %v457 = vunpack.c.l.b16 %v403
        %v458 = vunpack.c.l.b16 %v404
        %v459 = vunpack.c.l.b16 %v405
        %v460 = vunpack.c.l.b16 %v406
        %v461 = vunpack.c.l.b16 %v407
        %v462 = vunpack.c.l.b16 %v408
        %v463 = vunpack.c.l.b16 %v409
        %v464 = vunpack.c.l.b16 %v410
        %v465 = vunpack.c.l.b16 %v411
        %v466 = vunpack.c.l.b16 %v412
        %v467 = vpack.c.b16 %v452, %v451
        %v468 = vpack.c.b16 %v454, %v453
        %v469 = vpack.c.b16 %v456, %v455
        %v470 = vpack.c.b16 %v458, %v457
        %v471 = vpack.c.b16 %v460, %v459
        %v472 = vpack.c.b16 %v462, %v461
        %v473 = vpack.c.b16 %v464, %v463
        %v474 = vpack.c.b16 %v466, %v465
        %483 = vmatprep.subr.bf16.mxu0 0
        %484 = vmatpush1.bf16.msra.mxu0 %v467
        %485 = vmatprep.subr.bf16.mxu0 0
        %486 = vmatpush1.bf16.msra.mxu0 %v468
        %487 = vmatprep.subr.bf16.mxu0 0
        %488 = vmatpush1.bf16.msra.mxu0 %v469
        %489 = vmatprep.subr.bf16.mxu0 0
        %490 = vmatpush1.bf16.msra.mxu0 %v470
        %491 = vmatprep.subr.bf16.mxu0 0
        %492 = vmatpush1.bf16.msra.mxu0 %v471
        %493 = vmatprep.subr.bf16.mxu0 0
        %494 = vmatpush1.bf16.msra.mxu0 %v472
        %495 = vmatprep.subr.bf16.mxu0 0
        %496 = vmatpush1.bf16.msra.mxu0 %v473
        %497 = vmatprep.subr.bf16.mxu0 0
        %498 = vmatpush1.bf16.msra.mxu0 %v474
        %499 = vmatprep.subr.bf16.mxu0 0
        %500 = vmatpush1.bf16.msra.mxu0 0
        %501 = vmatprep.subr.bf16.mxu0 0
        %502 = vmatpush1.bf16.msra.mxu0 0
        %503 = vmatprep.subr.bf16.mxu0 0
        %504 = vmatpush1.bf16.msra.mxu0 0
        %505 = vmatprep.subr.bf16.mxu0 0
        %506 = vmatpush1.bf16.msra.mxu0 0
        %507 = vmatprep.subr.bf16.mxu0 0
        %508 = vmatpush1.bf16.msra.mxu0 0
        %509 = vmatprep.subr.bf16.mxu0 0
        %510 = vmatpush1.bf16.msra.mxu0 0
        %511 = vmatprep.subr.bf16.mxu0 0
        %512 = vmatpush1.bf16.msra.mxu0 0
        %513 = vmatprep.subr.bf16.mxu0 0
        %514 = vmatpush1.bf16.msra.mxu0 0
        %515 = vmatprep.mubr.bf16.mxu0 0
        %516 = vmatmul.mubr.bf16.gmra.mrb[0].mxu0 %v433
        %v517 = vpop.f32.mrb[0].mxu0
        %v518 = vadd.f32 0.0, %v517
        %v519 = vpop.f32.mrb[0].mxu0
        %v520 = vpop.f32.mrb[0].mxu0
        %v521 = vadd.f32 0.0, %v520
        %v522 = vpop.f32.mrb[0].mxu0
        %523 = vdwg.mxu0
        %v541 = vunpack.c.l.b16 %v379
        %v542 = vunpack.c.l.b16 %v380
        %v543 = vunpack.c.l.b16 %v381
        %v544 = vunpack.c.l.b16 %v382
        %v545 = vunpack.c.l.b16 %v383
        %v546 = vunpack.c.l.b16 %v384
        %v547 = vunpack.c.l.b16 %v385
        %v548 = vunpack.c.l.b16 %v386
        %v549 = vunpack.c.l.b16 %v387
        %v550 = vunpack.c.l.b16 %v388
        %v551 = vunpack.c.l.b16 %v389
        %v552 = vunpack.c.l.b16 %v390
        %v553 = vunpack.c.l.b16 %v391
        %v554 = vunpack.c.l.b16 %v392
        %v555 = vunpack.c.l.b16 %v393
        %v556 = vunpack.c.l.b16 %v394
        %v557 = vpack.c.b16 %v542, %v541
        %v558 = vpack.c.b16 %v544, %v543
        %v559 = vpack.c.b16 %v546, %v545
        %v560 = vpack.c.b16 %v548, %v547
        %v561 = vpack.c.b16 %v550, %v549
        %v562 = vpack.c.b16 %v552, %v551
        %v563 = vpack.c.b16 %v554, %v553
        %v564 = vpack.c.b16 %v556, %v555
        %573 = vmatprep.subr.bf16.mxu0 0
        %574 = vmatpush1.bf16.msra.mxu0 %v557
        %575 = vmatprep.subr.bf16.mxu0 0
        %576 = vmatpush1.bf16.msra.mxu0 %v558
        %577 = vmatprep.subr.bf16.mxu0 0
        %578 = vmatpush1.bf16.msra.mxu0 %v559
        %579 = vmatprep.subr.bf16.mxu0 0
        %580 = vmatpush1.bf16.msra.mxu0 %v560
        %581 = vmatprep.subr.bf16.mxu0 0
        %582 = vmatpush1.bf16.msra.mxu0 %v561
        %583 = vmatprep.subr.bf16.mxu0 0
        %584 = vmatpush1.bf16.msra.mxu0 %v562
        %585 = vmatprep.subr.bf16.mxu0 0
        %586 = vmatpush1.bf16.msra.mxu0 %v563
        %587 = vmatprep.subr.bf16.mxu0 0
        %588 = vmatpush1.bf16.msra.mxu0 %v564
        %589 = vmatprep.subr.bf16.mxu0 0
        %590 = vmatpush1.bf16.msra.mxu0 0
        %591 = vmatprep.subr.bf16.mxu0 0
        %592 = vmatpush1.bf16.msra.mxu0 0
        %593 = vmatprep.subr.bf16.mxu0 0
        %594 = vmatpush1.bf16.msra.mxu0 0
        %595 = vmatprep.subr.bf16.mxu0 0
        %596 = vmatpush1.bf16.msra.mxu0 0
        %597 = vmatprep.subr.bf16.mxu0 0
        %598 = vmatpush1.bf16.msra.mxu0 0
        %599 = vmatprep.subr.bf16.mxu0 0
        %600 = vmatpush1.bf16.msra.mxu0 0
        %601 = vmatprep.subr.bf16.mxu0 0
        %602 = vmatpush1.bf16.msra.mxu0 0
        %603 = vmatprep.subr.bf16.mxu0 0
        %604 = vmatpush1.bf16.msra.mxu0 0
        %605 = vmatprep.mubr.bf16.mxu0 0
        %606 = vmatmul.mubr.bf16.gmra.mrb[0].mxu0 %v419
        %v607 = vpop.f32.mrb[0].mxu0
        %v608 = vadd.f32 %v518, %v607
        %v609 = vpop.f32.mrb[0].mxu0
        %v610 = vpop.f32.mrb[0].mxu0
        %v611 = vadd.f32 %v521, %v610
        %v612 = vpop.f32.mrb[0].mxu0
        %613 = vdwg.mxu0
        %v614 = vld [vmem:[#allocation2] sm:$0xe]
        %s615 = scalar_lea.vmem [#allocation7], 128
        %v616 = vld [vmem:[%s615] sm:$0xf]
        %v617 = vld [vmem:[%s615 + $0x4] sm:$0xf]
        %v618 = vld [vmem:[%s615 + $0x8] sm:$0xf]
        %v619 = vld [vmem:[%s615 + $0xc] sm:$0xf]
        %v620 = vld [vmem:[%s615 + $0x10] sm:$0xf]
        %v621 = vld [vmem:[%s615 + $0x14] sm:$0xf]
        %v622 = vld [vmem:[%s615 + $0x18] sm:$0xf]
        %v623 = vld [vmem:[%s615 + $0x1c] sm:$0xf]
        %v624 = vld [vmem:[%s615 + $0x20] sm:$0xf]
        %v625 = vld [vmem:[%s615 + $0x24] sm:$0xf]
        %v626 = vld [vmem:[%s615 + $0x28] sm:$0xf]
        %v627 = vld [vmem:[%s615 + $0x2c] sm:$0xf]
        %v628 = vld [vmem:[%s615 + $0x30] sm:$0xf]
        %v629 = vld [vmem:[%s615 + $0x34] sm:$0xf]
        %v630 = vld [vmem:[%s615 + $0x38] sm:$0xf]
        %v631 = vld [vmem:[%s615 + $0x3c] sm:$0xf]
        %v633 = vunpack.c.l.b16 %v614
        %v634 = vpack.c.b16 %v417, %v633
        %vm635 = vcmask 1046528
        %v636 = vrot.slane %v634, 1
        %v637 = vrot.slane %v420, 1
        %v638 = vsel %vm635, %v636, %v637
        %v656 = vunpack.c.l.b16 %v616
        %v657 = vunpack.c.l.b16 %v617
        %v658 = vunpack.c.l.b16 %v618
        %v659 = vunpack.c.l.b16 %v619
        %v660 = vunpack.c.l.b16 %v620
        %v661 = vunpack.c.l.b16 %v621
        %v662 = vunpack.c.l.b16 %v622
        %v663 = vunpack.c.l.b16 %v623
        %v664 = vunpack.c.l.b16 %v624
        %v665 = vunpack.c.l.b16 %v625
        %v666 = vunpack.c.l.b16 %v626
        %v667 = vunpack.c.l.b16 %v627
        %v668 = vunpack.c.l.b16 %v628
        %v669 = vunpack.c.l.b16 %v629
        %v670 = vunpack.c.l.b16 %v630
        %v671 = vunpack.c.l.b16 %v631
        %v672 = vpack.c.b16 %v657, %v656
        %v673 = vpack.c.b16 %v659, %v658
        %v674 = vpack.c.b16 %v661, %v660
        %v675 = vpack.c.b16 %v663, %v662
        %v676 = vpack.c.b16 %v665, %v664
        %v677 = vpack.c.b16 %v667, %v666
        %v678 = vpack.c.b16 %v669, %v668
        %v679 = vpack.c.b16 %v671, %v670
        %688 = vmatprep.subr.bf16.mxu0 0
        %689 = vmatpush1.bf16.msra.mxu0 %v672
        %690 = vmatprep.subr.bf16.mxu0 0
        %691 = vmatpush1.bf16.msra.mxu0 %v673
        %692 = vmatprep.subr.bf16.mxu0 0
        %693 = vmatpush1.bf16.msra.mxu0 %v674
        %694 = vmatprep.subr.bf16.mxu0 0
        %695 = vmatpush1.bf16.msra.mxu0 %v675
        %696 = vmatprep.subr.bf16.mxu0 0
        %697 = vmatpush1.bf16.msra.mxu0 %v676
        %698 = vmatprep.subr.bf16.mxu0 0
        %699 = vmatpush1.bf16.msra.mxu0 %v677
        %700 = vmatprep.subr.bf16.mxu0 0
        %701 = vmatpush1.bf16.msra.mxu0 %v678
        %702 = vmatprep.subr.bf16.mxu0 0
        %703 = vmatpush1.bf16.msra.mxu0 %v679
        %704 = vmatprep.subr.bf16.mxu0 0
        %705 = vmatpush1.bf16.msra.mxu0 0
        %706 = vmatprep.subr.bf16.mxu0 0
        %707 = vmatpush1.bf16.msra.mxu0 0
        %708 = vmatprep.subr.bf16.mxu0 0
        %709 = vmatpush1.bf16.msra.mxu0 0
        %710 = vmatprep.subr.bf16.mxu0 0
        %711 = vmatpush1.bf16.msra.mxu0 0
        %712 = vmatprep.subr.bf16.mxu0 0
        %713 = vmatpush1.bf16.msra.mxu0 0
        %714 = vmatprep.subr.bf16.mxu0 0
        %715 = vmatpush1.bf16.msra.mxu0 0
        %716 = vmatprep.subr.bf16.mxu0 0
        %717 = vmatpush1.bf16.msra.mxu0 0
        %718 = vmatprep.subr.bf16.mxu0 0
        %719 = vmatpush1.bf16.msra.mxu0 0
        %720 = vmatprep.mubr.bf16.mxu0 0
        %721 = vmatmul.mubr.bf16.gmra.mrb[0].mxu0 %v638
        %v722 = vpop.f32.mrb[0].mxu0
        %v723 = vadd.f32 0.0, %v722
        %v724 = vpop.f32.mrb[0].mxu0
        %v725 = vpop.f32.mrb[0].mxu0
        %v726 = vadd.f32 0.0, %v725
        %v727 = vpop.f32.mrb[0].mxu0
        %728 = vdwg.mxu0
        %v729 = vadd.f32 %v608, %v723
        %v730 = vadd.f32 %v611, %v726
        %v731 = vld [vmem:[%s2] sm:$0x1]
        %v733 = vlaneseq
        %v734 = vshrl.u32 %v733, 7
        %v735 = vsub.s32 0, %v734
        %v736 = vrot.slane %v731, %v735
        %v738 = vmul.f32 %v729, %v736
        %v739 = vmul.f32 %v730, %v736
        %v740 = vld [vmem:[%s3] sm:$0x1]
        %v742 = vlaneseq
        %v743 = vshrl.u32 %v742, 7
        %v744 = vsub.s32 0, %v743
        %v745 = vrot.slane %v740, %v744
        %v747 = vadd.f32 %v738, %v745
        %v748 = vadd.f32 %v739, %v745
        %v749 = vmax.f32 %v747, 0.0
        %v750 = vmax.f32 %v748, 0.0
        %v751 = vld [vmem:[#allocation3] sm:$0x1]
        %v752 = vsel %vm329, 0, %v751
        %753 = vst [vmem:[#allocation3] sm:$0x1] %v752
        %v754 = vld [vmem:[#allocation3 + $0x8] sm:$0x1]
        %v755 = vsel %vm334, 0, %v754
        %756 = vst [vmem:[#allocation3 + $0x8] sm:$0x1] %v755
        %v757 = vpack.c.bf16 %v750, %v749
        %v759 = vunpack.c.l.b16 %v757
        %v760 = vunpack.c.h.b16 %v757
        %v761 = vpack.c.b16 %v759, %v759
        %v762 = vpack.c.b16 %v760, %v760
        %v764 = vshrl.u32 %v761, 16
        %v766 = vrot.slane %v764, 7
        %v767 = vshll.u32 %v761, 16
        %v769 = vor.u32 %v766, %v767
        %v770 = vrot.slane %v766, 4
        %v772 = vshrl.u32 %v762, 16
        %v774 = vrot.slane %v772, 7
        %v775 = vshll.u32 %v762, 16
        %v777 = vor.u32 %v774, %v775
        %v778 = vsel %vm347, %v770, %v777
        %v779 = vrot.slane %v774, 4
        %v783 = vld [vmem:[#allocation3] sm:$0xf]
        %v784 = vsel %vm369, %v769, %v783
        %785 = vst [vmem:[#allocation3] sm:$0xf] %v784
        %786 = vst [vmem:[#allocation3 + $0x4] sm:$0xf] %v778
        %v787 = vld [vmem:[#allocation3 + $0x8] sm:$0x1]
        %v788 = vsel %vm329, %v779, %v787
        %789 = vst [vmem:[#allocation3 + $0x8] sm:$0x1] %v788
        %v790 = vld [vmem:[#allocation3] sm:$0xf]
        %v791 = vld [vmem:[#allocation3 + $0x4] sm:$0xf]
        %v792 = vld [vmem:[#allocation9] sm:$0xf]
        %v793 = vld [vmem:[#allocation9 + $0x4] sm:$0xf]
        %v794 = vld [vmem:[#allocation9 + $0x8] sm:$0xf]
        %v795 = vld [vmem:[#allocation9 + $0xc] sm:$0xf]
        %v796 = vld [vmem:[#allocation9 + $0x10] sm:$0xf]
        %v797 = vld [vmem:[#allocation9 + $0x14] sm:$0xf]
        %v798 = vld [vmem:[#allocation9 + $0x18] sm:$0xf]
        %v799 = vld [vmem:[#allocation9 + $0x1c] sm:$0xf]
        %v800 = vld [vmem:[#allocation9 + $0x20] sm:$0xf]
        %v801 = vld [vmem:[#allocation9 + $0x24] sm:$0xf]
        %v802 = vld [vmem:[#allocation9 + $0x28] sm:$0xf]
        %v803 = vld [vmem:[#allocation9 + $0x2c] sm:$0xf]
        %v804 = vld [vmem:[#allocation9 + $0x30] sm:$0xf]
        %v805 = vld [vmem:[#allocation9 + $0x34] sm:$0xf]
        %v806 = vld [vmem:[#allocation9 + $0x38] sm:$0xf]
        %v807 = vld [vmem:[#allocation9 + $0x3c] sm:$0xf]
        %v808 = vld [vmem:[#allocation3 + $0x8] sm:$0x1]
        %s809 = scalar_lea.vmem [#allocation9], 64
        %v810 = vld [vmem:[%s809] sm:$0xf]
        %v811 = vld [vmem:[%s809 + $0x4] sm:$0xf]
        %v812 = vld [vmem:[%s809 + $0x8] sm:$0xf]
        %v813 = vld [vmem:[%s809 + $0xc] sm:$0xf]
        %v814 = vld [vmem:[%s809 + $0x10] sm:$0xf]
        %v815 = vld [vmem:[%s809 + $0x14] sm:$0xf]
        %v816 = vld [vmem:[%s809 + $0x18] sm:$0xf]
        %v817 = vld [vmem:[%s809 + $0x1c] sm:$0xf]
        %v818 = vld [vmem:[%s809 + $0x20] sm:$0xf]
        %v819 = vld [vmem:[%s809 + $0x24] sm:$0xf]
        %v820 = vld [vmem:[%s809 + $0x28] sm:$0xf]
        %v821 = vld [vmem:[%s809 + $0x2c] sm:$0xf]
        %v822 = vld [vmem:[%s809 + $0x30] sm:$0xf]
        %v823 = vld [vmem:[%s809 + $0x34] sm:$0xf]
        %v824 = vld [vmem:[%s809 + $0x38] sm:$0xf]
        %v825 = vld [vmem:[%s809 + $0x3c] sm:$0xf]
        %v829 = vunpack.c.l.b16 %v790
        %v830 = vunpack.c.l.b16 %v791
        %v831 = vunpack.c.l.b16 %v808
        %v832 = vpack.c.b16 %v830, %v829
        %v833 = vpack.c.b16 %v831, %v831
        %v835 = vshrl.u32 %v832, 16
        %v837 = vshll.u32 %v832, 16
        %v839 = vrot.slane %v837, 1
        %v840 = vor.u32 %v835, %v839
        %v842 = vshll.u32 %v833, 16
        %v844 = vrot.slane %v842, 1
        %v845 = vsel %vm421, %v840, %v844
        %v863 = vunpack.c.l.b16 %v810
        %v864 = vunpack.c.l.b16 %v811
        %v865 = vunpack.c.l.b16 %v812
        %v866 = vunpack.c.l.b16 %v813
        %v867 = vunpack.c.l.b16 %v814
        %v868 = vunpack.c.l.b16 %v815
        %v869 = vunpack.c.l.b16 %v816
        %v870 = vunpack.c.l.b16 %v817
        %v871 = vunpack.c.l.b16 %v818
        %v872 = vunpack.c.l.b16 %v819
        %v873 = vunpack.c.l.b16 %v820
        %v874 = vunpack.c.l.b16 %v821
        %v875 = vunpack.c.l.b16 %v822
        %v876 = vunpack.c.l.b16 %v823
        %v877 = vunpack.c.l.b16 %v824
        %v878 = vunpack.c.l.b16 %v825
        %v879 = vpack.c.b16 %v864, %v863
        %v880 = vpack.c.b16 %v866, %v865
        %v881 = vpack.c.b16 %v868, %v867
        %v882 = vpack.c.b16 %v870, %v869
        %v883 = vpack.c.b16 %v872, %v871
        %v884 = vpack.c.b16 %v874, %v873
        %v885 = vpack.c.b16 %v876, %v875
        %v886 = vpack.c.b16 %v878, %v877
        %895 = vmatprep.subr.bf16.mxu0 0
        %896 = vmatpush1.bf16.msra.mxu0 %v879
        %897 = vmatprep.subr.bf16.mxu0 0
        %898 = vmatpush1.bf16.msra.mxu0 %v880
        %899 = vmatprep.subr.bf16.mxu0 0
        %900 = vmatpush1.bf16.msra.mxu0 %v881
        %901 = vmatprep.subr.bf16.mxu0 0
        %902 = vmatpush1.bf16.msra.mxu0 %v882
        %903 = vmatprep.subr.bf16.mxu0 0
        %904 = vmatpush1.bf16.msra.mxu0 %v883
        %905 = vmatprep.subr.bf16.mxu0 0
        %906 = vmatpush1.bf16.msra.mxu0 %v884
        %907 = vmatprep.subr.bf16.mxu0 0
        %908 = vmatpush1.bf16.msra.mxu0 %v885
        %909 = vmatprep.subr.bf16.mxu0 0
        %910 = vmatpush1.bf16.msra.mxu0 %v886
        %911 = vmatprep.subr.bf16.mxu0 0
        %912 = vmatpush1.bf16.msra.mxu0 0
        %913 = vmatprep.subr.bf16.mxu0 0
        %914 = vmatpush1.bf16.msra.mxu0 0
        %915 = vmatprep.subr.bf16.mxu0 0
        %916 = vmatpush1.bf16.msra.mxu0 0
        %917 = vmatprep.subr.bf16.mxu0 0
        %918 = vmatpush1.bf16.msra.mxu0 0
        %919 = vmatprep.subr.bf16.mxu0 0
        %920 = vmatpush1.bf16.msra.mxu0 0
        %921 = vmatprep.subr.bf16.mxu0 0
        %922 = vmatpush1.bf16.msra.mxu0 0
        %923 = vmatprep.subr.bf16.mxu0 0
        %924 = vmatpush1.bf16.msra.mxu0 0
        %925 = vmatprep.subr.bf16.mxu0 0
        %926 = vmatpush1.bf16.msra.mxu0 0
        %927 = vmatprep.mubr.bf16.mxu0 0
        %928 = vmatmul.mubr.bf16.gmra.mrb[0].mxu0 %v845
        %v929 = vpop.f32.mrb[0].mxu0
        %v930 = vadd.f32 0.0, %v929
        %v931 = vpop.f32.mrb[0].mxu0
        %v932 = vpop.f32.mrb[0].mxu0
        %v933 = vadd.f32 0.0, %v932
        %v934 = vpop.f32.mrb[0].mxu0
        %935 = vdwg.mxu0
        %v953 = vunpack.c.l.b16 %v792
        %v954 = vunpack.c.l.b16 %v793
        %v955 = vunpack.c.l.b16 %v794
        %v956 = vunpack.c.l.b16 %v795
        %v957 = vunpack.c.l.b16 %v796
        %v958 = vunpack.c.l.b16 %v797
        %v959 = vunpack.c.l.b16 %v798
        %v960 = vunpack.c.l.b16 %v799
        %v961 = vunpack.c.l.b16 %v800
        %v962 = vunpack.c.l.b16 %v801
        %v963 = vunpack.c.l.b16 %v802
        %v964 = vunpack.c.l.b16 %v803
        %v965 = vunpack.c.l.b16 %v804
        %v966 = vunpack.c.l.b16 %v805
        %v967 = vunpack.c.l.b16 %v806
        %v968 = vunpack.c.l.b16 %v807
        %v969 = vpack.c.b16 %v954, %v953
        %v970 = vpack.c.b16 %v956, %v955
        %v971 = vpack.c.b16 %v958, %v957
        %v972 = vpack.c.b16 %v960, %v959
        %v973 = vpack.c.b16 %v962, %v961
        %v974 = vpack.c.b16 %v964, %v963
        %v975 = vpack.c.b16 %v966, %v965
        %v976 = vpack.c.b16 %v968, %v967
        %985 = vmatprep.subr.bf16.mxu0 0
        %986 = vmatpush1.bf16.msra.mxu0 %v969
        %987 = vmatprep.subr.bf16.mxu0 0
        %988 = vmatpush1.bf16.msra.mxu0 %v970
        %989 = vmatprep.subr.bf16.mxu0 0
        %990 = vmatpush1.bf16.msra.mxu0 %v971
        %991 = vmatprep.subr.bf16.mxu0 0
        %992 = vmatpush1.bf16.msra.mxu0 %v972
        %993 = vmatprep.subr.bf16.mxu0 0
        %994 = vmatpush1.bf16.msra.mxu0 %v973
        %995 = vmatprep.subr.bf16.mxu0 0
        %996 = vmatpush1.bf16.msra.mxu0 %v974
        %997 = vmatprep.subr.bf16.mxu0 0
        %998 = vmatpush1.bf16.msra.mxu0 %v975
        %999 = vmatprep.subr.bf16.mxu0 0
        %1000 = vmatpush1.bf16.msra.mxu0 %v976
        %1001 = vmatprep.subr.bf16.mxu0 0
        %1002 = vmatpush1.bf16.msra.mxu0 0
        %1003 = vmatprep.subr.bf16.mxu0 0
        %1004 = vmatpush1.bf16.msra.mxu0 0
        %1005 = vmatprep.subr.bf16.mxu0 0
        %1006 = vmatpush1.bf16.msra.mxu0 0
        %1007 = vmatprep.subr.bf16.mxu0 0
        %1008 = vmatpush1.bf16.msra.mxu0 0
        %1009 = vmatprep.subr.bf16.mxu0 0
        %1010 = vmatpush1.bf16.msra.mxu0 0
        %1011 = vmatprep.subr.bf16.mxu0 0
        %1012 = vmatpush1.bf16.msra.mxu0 0
        %1013 = vmatprep.subr.bf16.mxu0 0
        %1014 = vmatpush1.bf16.msra.mxu0 0
        %1015 = vmatprep.subr.bf16.mxu0 0
        %1016 = vmatpush1.bf16.msra.mxu0 0
        %1017 = vmatprep.mubr.bf16.mxu0 0
        %1018 = vmatmul.mubr.bf16.gmra.mrb[0].mxu0 %v832
        %v1019 = vpop.f32.mrb[0].mxu0
        %v1020 = vadd.f32 %v930, %v1019
        %v1021 = vpop.f32.mrb[0].mxu0
        %v1022 = vpop.f32.mrb[0].mxu0
        %v1023 = vadd.f32 %v933, %v1022
        %v1024 = vpop.f32.mrb[0].mxu0
        %1025 = vdwg.mxu0
        %v1026 = vld [vmem:[#allocation3] sm:$0xe]
        %s1027 = scalar_lea.vmem [#allocation9], 128
        %v1028 = vld [vmem:[%s1027] sm:$0xf]
        %v1029 = vld [vmem:[%s1027 + $0x4] sm:$0xf]
        %v1030 = vld [vmem:[%s1027 + $0x8] sm:$0xf]
        %v1031 = vld [vmem:[%s1027 + $0xc] sm:$0xf]
        %v1032 = vld [vmem:[%s1027 + $0x10] sm:$0xf]
        %v1033 = vld [vmem:[%s1027 + $0x14] sm:$0xf]
        %v1034 = vld [vmem:[%s1027 + $0x18] sm:$0xf]
        %v1035 = vld [vmem:[%s1027 + $0x1c] sm:$0xf]
        %v1036 = vld [vmem:[%s1027 + $0x20] sm:$0xf]
        %v1037 = vld [vmem:[%s1027 + $0x24] sm:$0xf]
        %v1038 = vld [vmem:[%s1027 + $0x28] sm:$0xf]
        %v1039 = vld [vmem:[%s1027 + $0x2c] sm:$0xf]
        %v1040 = vld [vmem:[%s1027 + $0x30] sm:$0xf]
        %v1041 = vld [vmem:[%s1027 + $0x34] sm:$0xf]
        %v1042 = vld [vmem:[%s1027 + $0x38] sm:$0xf]
        %v1043 = vld [vmem:[%s1027 + $0x3c] sm:$0xf]
        %v1045 = vunpack.c.l.b16 %v1026
        %v1046 = vpack.c.b16 %v830, %v1045
        %v1047 = vrot.slane %v1046, 1
        %v1048 = vrot.slane %v833, 1
        %v1049 = vsel %vm635, %v1047, %v1048
        %v1067 = vunpack.c.l.b16 %v1028
        %v1068 = vunpack.c.l.b16 %v1029
        %v1069 = vunpack.c.l.b16 %v1030
        %v1070 = vunpack.c.l.b16 %v1031
        %v1071 = vunpack.c.l.b16 %v1032
        %v1072 = vunpack.c.l.b16 %v1033
        %v1073 = vunpack.c.l.b16 %v1034
        %v1074 = vunpack.c.l.b16 %v1035
        %v1075 = vunpack.c.l.b16 %v1036
        %v1076 = vunpack.c.l.b16 %v1037
        %v1077 = vunpack.c.l.b16 %v1038
        %v1078 = vunpack.c.l.b16 %v1039
        %v1079 = vunpack.c.l.b16 %v1040
        %v1080 = vunpack.c.l.b16 %v1041
        %v1081 = vunpack.c.l.b16 %v1042
        %v1082 = vunpack.c.l.b16 %v1043
        %v1083 = vpack.c.b16 %v1068, %v1067
        %v1084 = vpack.c.b16 %v1070, %v1069
        %v1085 = vpack.c.b16 %v1072, %v1071
        %v1086 = vpack.c.b16 %v1074, %v1073
        %v1087 = vpack.c.b16 %v1076, %v1075
        %v1088 = vpack.c.b16 %v1078, %v1077
        %v1089 = vpack.c.b16 %v1080, %v1079
        %v1090 = vpack.c.b16 %v1082, %v1081
        %1099 = vmatprep.subr.bf16.mxu0 0
        %1100 = vmatpush1.bf16.msra.mxu0 %v1083
        %1101 = vmatprep.subr.bf16.mxu0 0
        %1102 = vmatpush1.bf16.msra.mxu0 %v1084
        %1103 = vmatprep.subr.bf16.mxu0 0
        %1104 = vmatpush1.bf16.msra.mxu0 %v1085
        %1105 = vmatprep.subr.bf16.mxu0 0
        %1106 = vmatpush1.bf16.msra.mxu0 %v1086
        %1107 = vmatprep.subr.bf16.mxu0 0
        %1108 = vmatpush1.bf16.msra.mxu0 %v1087
        %1109 = vmatprep.subr.bf16.mxu0 0
        %1110 = vmatpush1.bf16.msra.mxu0 %v1088
        %1111 = vmatprep.subr.bf16.mxu0 0
        %1112 = vmatpush1.bf16.msra.mxu0 %v1089
        %1113 = vmatprep.subr.bf16.mxu0 0
        %1114 = vmatpush1.bf16.msra.mxu0 %v1090
        %1115 = vmatprep.subr.bf16.mxu0 0
        %1116 = vmatpush1.bf16.msra.mxu0 0
        %1117 = vmatprep.subr.bf16.mxu0 0
        %1118 = vmatpush1.bf16.msra.mxu0 0
        %1119 = vmatprep.subr.bf16.mxu0 0
        %1120 = vmatpush1.bf16.msra.mxu0 0
        %1121 = vmatprep.subr.bf16.mxu0 0
        %1122 = vmatpush1.bf16.msra.mxu0 0
        %1123 = vmatprep.subr.bf16.mxu0 0
        %1124 = vmatpush1.bf16.msra.mxu0 0
        %1125 = vmatprep.subr.bf16.mxu0 0
        %1126 = vmatpush1.bf16.msra.mxu0 0
        %1127 = vmatprep.subr.bf16.mxu0 0
        %1128 = vmatpush1.bf16.msra.mxu0 0
        %1129 = vmatprep.subr.bf16.mxu0 0
        %1130 = vmatpush1.bf16.msra.mxu0 0
        %1131 = vmatprep.mubr.bf16.mxu0 0
        %1132 = vmatmul.mubr.bf16.gmra.mrb[0].mxu0 %v1049
        %v1133 = vpop.f32.mrb[0].mxu0
        %v1134 = vadd.f32 0.0, %v1133
        %v1135 = vpop.f32.mrb[0].mxu0
        %v1136 = vpop.f32.mrb[0].mxu0
        %v1137 = vadd.f32 0.0, %v1136
        %v1138 = vpop.f32.mrb[0].mxu0
        %1139 = vdwg.mxu0
        %v1140 = vadd.f32 %v1020, %v1134
        %v1141 = vadd.f32 %v1023, %v1137
        %v1142 = vld [vmem:[%s5] sm:$0x1]
        %v1144 = vlaneseq
        %v1145 = vshrl.u32 %v1144, 7
        %v1146 = vsub.s32 0, %v1145
        %v1147 = vrot.slane %v1142, %v1146
        %v1149 = vmul.f32 %v1140, %v1147
        %v1150 = vmul.f32 %v1141, %v1147
        %v1151 = vld [vmem:[%s6] sm:$0x1]
        %v1153 = vlaneseq
        %v1154 = vshrl.u32 %v1153, 7
        %v1155 = vsub.s32 0, %v1154
        %v1156 = vrot.slane %v1151, %v1155
        %v1158 = vadd.f32 %v1149, %v1156
        %v1159 = vadd.f32 %v1150, %v1156
        %v1160 = vld [vmem:[%s287] sm:$0xff]
        %v1161 = vld [vmem:[%s287 + $0x8] sm:$0xff]
        %v1162 = vadd.f32 %v1158, %v1160
        %v1163 = vadd.f32 %v1159, %v1161
        %v1164 = vmax.f32 %v1162, 0.0
        %v1165 = vmax.f32 %v1163, 0.0
        %1166 = vst [vmem:[%s325] sm:$0xff] %v1164
        %1167 = vst [vmem:[%s325 + $0x8] sm:$0xff] %v1165
        %s1168 = sand.u32 %s185, 1
        %s1169 = scalar_lea.sflag [#allocation6], %s1168
        %s1170 = sand.u32 %s185, 1
        %s1171 = smul.addr %s1170, 16
        %s1172 = scalar_lea.vmem [#allocation10], %s1171
        // Predicated region
        $region61: #{tpu_custom_call.1} parent=47 // pred_check
          %p1173 = pneg %p195
        $region62: #{tpu_custom_call.1} parent=47 // pred_check_branch
          %1175 = sbr.rel (%p1173) target = $region64
        $region63: #{tpu_custom_call.1} parent=47 // pred_region
          %s1177 = ssub.s32 256, 256
          %1178 = vsyncadd %s1169, %s1177
          %s1179 = smul.addr %s25, 2
          %s1180 = smul.addr %s1179, 128
          %s1181 = scalar_lea.hbm %s7, %s1180
          %s1182 = sshll.u32 %s1172, 4
          %s1183 = int_to_ptr.vmem [resolvable:$true] %s1182
          %1188 = dma.vmem_to_hbm [thread:$0]  %s1183, 256, %s1181, %s1169, 128, 128, 8
        $region64: #{tpu_custom_call.1} parent=47 // pred_fallthru
          _
      $region48: #{tpu_custom_call.1} parent=5 // pred_fallthru
        _
      %p1189 = scmp.le.s32.totalorder 2, %s20
      // Predicated region
      $region65: #{tpu_custom_call.1} parent=5 // pred_check
        %p1190 = pneg %p1189
      $region66: #{tpu_custom_call.1} parent=5 // pred_check_branch
        %1192 = sbr.rel (%p1190) target = $region68
      $region67: #{tpu_custom_call.1} parent=5 // pred_region
        %s1193 = ssub.s32 %s20, 2
        // Predicated region
        $region69: #{tpu_custom_call.1} parent=67 // pred_check
          %p1194 = pneg %p201
        $region70: #{tpu_custom_call.1} parent=67 // pred_check_branch
          %1196 = sbr.rel (%p1194) target = $region72
        $region71: #{tpu_custom_call.1} parent=67 // pred_region
          %s1197 = sand.u32 %s186, 1
          %s1198 = scalar_lea.sflag [#allocation6], %s1197
          %s1199 = sand.u32 %s186, 1
          %s1200 = smul.addr %s1199, 16
          %s1201 = scalar_lea.vmem [#allocation10], %s1200
          %1202 = dma.done %s1198, 256
        $region72: #{tpu_custom_call.1} parent=67 // pred_fallthru
          _
      $region68: #{tpu_custom_call.1} parent=5 // pred_fallthru
        _
    $region6: #{tpu_custom_call.1} parent=1 // loop_footer
      %s24 = sadd.s32 1, %s20
    $region7: #{tpu_custom_call.1} parent=1 // loop_footer_branch
      %19 = sbr.rel target = $region3
    $region8: #{tpu_custom_call.1} parent=1 // loop_exit
      _
    %1203 = vsyncpa [#allocation5], 1
    %s1204 = scalar_lea.sflag [#allocation5], 1
    %1205 = vsyncpa %s1204, 1
    %1206 = vsyncpa [#allocation8], 1
    %1207 = vsyncpa [#allocation6], 1
    %s1208 = scalar_lea.sflag [#allocation6], 1
    %1209 = vsyncpa %s1208, 1

</llo_original>
